<compile_context>
chip_gen: v7x
topology: tpu7x:2x2x1
jax: 0.10.0
libtpu: 0.0.40
codegen_flags: <defaults>
</compile_context>

<pallas_src>
import math
import functools

import jax
import jax.numpy as jnp
from jax import lax
from jax.experimental import pallas as pl
from jax.experimental.pallas import tpu as pltpu

EMBED_SIZE = 8
SEQ_LENGTH = 5
HEADS = 2
HEAD_DIM = EMBED_SIZE // HEADS


def _round_up(x, m):
    return (x + m - 1) // m * m


def _mha_kernel(x_ref, wqkv_ref, bqkv_ref, wo_ref, bo_ref, bias_ref, o_ref, *,
                heads, d_pad):
    # x_ref:    (tile_m, E)              tile_m = tile_b * S_pad rows
    # wqkv_ref: (E, 3*heads*Dp)          [Q_h0|Q_h1|K_h0|K_h1|V_h0|V_h1], each Dp
    #                                    lanes (Q columns pre-scaled by 1/sqrt(d))
    # bqkv_ref: (1, 3*heads*Dp)
    # wo_ref:   (heads*Dp, E)            rows padded with zeros to match head slots
    # bo_ref:   (1, E)
    # bias_ref: (tile_m, tile_m)         block-diagonal additive causal bias
    # o_ref:    (tile_m, E)
    g = heads * d_pad
    # TODO(synk): for large E on v6e/v7x cast the matmul operands to bf16
    # (keep the softmax math in f32) for full MXU rate and half the VMEM.
    x = x_ref[...].astype(jnp.float32)

    # Single fused QKV projection over the whole row tile (one MXU pass).
    qkv = jnp.dot(x, wqkv_ref[...], preferred_element_type=jnp.float32) + bqkv_ref[...]
    bias = bias_ref[...]

    head_out = []
    for h in range(heads):                      # tiny static loop, fully unrolls
        q0 = 0 * g + h * d_pad
        k0 = 1 * g + h * d_pad
        v0 = 2 * g + h * d_pad
        qh = qkv[:, q0:q0 + d_pad]              # (tile_m, Dp) lane-aligned view
        kh = qkv[:, k0:k0 + d_pad]
        vh = qkv[:, v0:v0 + d_pad]

        # Q_h @ K_h^T without an explicit transpose: contract the last dims.
        s = lax.dot_general(qh, kh, (((1,), (1,)), ((), ())),
                            preferred_element_type=jnp.float32) + bias
        m = jnp.max(s, axis=-1, keepdims=True)
        p = jnp.exp(s - m)
        attn = p / jnp.sum(p, axis=-1, keepdims=True)   # exact divide (tiny cost)
        head_out.append(jnp.dot(attn, vh, preferred_element_type=jnp.float32))

    # Lane-aligned concat (each block is Dp=128k lanes wide) — stays in vregs,
    # no VMEM scratch round-trip before the output projection.
    ctx = jnp.concatenate(head_out, axis=-1)            # (tile_m, heads*Dp)
    out = jnp.dot(ctx, wo_ref[...], preferred_element_type=jnp.float32) + bo_ref[...]
    # TODO(synk): for large B*S present the output as a lane-dense
    # (tile_m*E/128, 128) slab (wrapper-side reshape) to avoid masked vst.msk
    # stores; at E=8/S=5 the whole output is a fraction of one vreg.
    o_ref[...] = out.astype(o_ref.dtype)


def multi_head_attention(x, params, mask, *, heads=HEADS, tile_b=None):
    """x: (B, S, E) f32; params: dict of [in,out] weights / (1,out) biases;
    mask: (S, S) with 0 = masked (causal tril in the spec)."""
    B, S, E = x.shape
    D = E // heads
    scale = 1.0 / math.sqrt(D)

    # ---- one-time layout prep (plain JAX, outside the kernel) -------------
    S_pad = _round_up(S, 8)                 # sublane-aligned rows per sequence
    Dp = _round_up(max(D, 128), 128)        # lane-aligned per-head column block
    G = heads * Dp

    def pad_cols(w, b, s):
        wp = jnp.zeros((E, G), jnp.float32)
        bp = jnp.zeros((1, G), jnp.float32)
        for h in range(heads):
            wp = wp.at[:, h * Dp:h * Dp + D].set(w[:, h * D:(h + 1) * D] * s)
            bp = bp.at[:, h * Dp:h * Dp + D].set(b[:, h * D:(h + 1) * D] * s)
        return wp, bp

    # Fuse Q/K/V into one (E, 3G) weight; fold the attention scale into Q.
    wq, bq = pad_cols(params["wq"], params["bq"], scale)
    wk, bk = pad_cols(params["wk"], params["bk"], 1.0)
    wv, bv = pad_cols(params["wv"], params["bv"], 1.0)
    wqkv = jnp.concatenate([wq, wk, wv], axis=1)         # (E, 3G)
    bqkv = jnp.concatenate([bq, bk, bv], axis=1)         # (1, 3G)

    # W_o rows padded to match the per-head 128-lane slots (zeros kill padding).
    wo = jnp.zeros((G, E), jnp.float32)
    for h in range(heads):
        wo = wo.at[h * Dp:h * Dp + D, :].set(params["wo"][h * D:(h + 1) * D, :])
    bo = params["bo"]

    # Tile selection: tile_b whole sequences per grid step (tall M for the MXU);
    # keep >= 2 grid steps when B allows so both v7x TensorCores get work.
    if tile_b is None:
        max_tile_b = max(1, min(B, 512 // S_pad))        # ~512 rows/step (v6e sweet spot)
        if B >= 2:
            max_tile_b = min(max_tile_b, max(1, B // 2))
        tile_b = max(d for d in range(1, max_tile_b + 1) if B % d == 0)
    assert B % tile_b == 0, "tile_b must divide the batch"
    tile_m = tile_b * S_pad

    # Block-diagonal additive causal bias: visible iff same sequence AND the
    # user mask allows it; padded rows attend only to themselves (outputs for
    # padded rows are sliced away in the wrapper, so no NaN and no leakage).
    mask_pad = jnp.eye(S_pad, dtype=jnp.float32).at[:S, :S].set(mask.astype(jnp.float32))
    r = jnp.arange(tile_m)
    same_seq = (r[:, None] // S_pad) == (r[None, :] // S_pad)
    vis = mask_pad[r[:, None] % S_pad, r[None, :] % S_pad] > 0
    bias = jnp.where(same_seq & vis, 0.0, -1e30).astype(jnp.float32)

    # Row-tiled, sublane-padded input: (B*S_pad, E).
    x2d = jnp.zeros((B, S_pad, E), x.dtype).at[:, :S, :].set(x).reshape(B * S_pad, E)

    grid = (B // tile_b,)
    # Grid-invariant operands (constant index_map).  For large E, also mark
    # them pipeline_mode=pl.Buffered(1) and set vmem_limit_bytes explicitly
    # (negligible at E=8, matters under v7x's 64 MiB VMEM).
    const = lambda shape: pl.BlockSpec(shape, lambda i: (0, 0))
    kernel = functools.partial(_mha_kernel, heads=heads, d_pad=Dp)

    out2d = pl.pallas_call(
        kernel,
        out_shape=jax.ShapeDtypeStruct((B * S_pad, E), x.dtype),
        grid_spec=pltpu.PrefetchScalarGridSpec(
            num_scalar_prefetch=0,
            grid=grid,
            in_specs=[
                pl.BlockSpec((tile_m, E), lambda i: (i, 0)),   # x rows
                const((E, 3 * G)), const((1, 3 * G)),          # fused padded W_qkv, b_qkv
                const((G, E)), const((1, E)),                  # padded W_o, b_o
                const((tile_m, tile_m)),                       # block-diag causal bias
            ],
            out_specs=pl.BlockSpec((tile_m, E), lambda i: (i, 0)),
        ),
        compiler_params=pltpu.CompilerParams(
            dimension_semantics=("parallel",)),
    )(x2d, wqkv, bqkv, wo, bo, bias)

    return out2d.reshape(B, S_pad, E)[:, :S, :]


def init_params(key, embed_size):
    """Deterministic init mimicking nn.Linear default (uniform(-1/sqrt(in), 1/sqrt(in))).
    Weights are stored already transposed to (in, out)."""
    bound = 1.0 / math.sqrt(embed_size)
    keys = jax.random.split(key, 8)
    u = lambda k, shape: jax.random.uniform(k, shape, jnp.float32, -bound, bound)
    return {
        "wq": u(keys[0], (embed_size, embed_size)), "bq": u(keys[1], (1, embed_size)),
        "wk": u(keys[2], (embed_size, embed_size)), "bk": u(keys[3], (1, embed_size)),
        "wv": u(keys[4], (embed_size, embed_size)), "bv": u(keys[5], (1, embed_size)),
        "wo": u(keys[6], (embed_size, embed_size)), "bo": u(keys[7], (1, embed_size)),
    }


def _reference(x, params, mask):
    """Pure-JAX reference matching the PyTorch forward exactly."""
    B, S, E = x.shape
    hp = "highest"
    q = jnp.dot(x, params["wq"], precision=hp) + params["bq"]
    k = jnp.dot(x, params["wk"], precision=hp) + params["bk"]
    v = jnp.dot(x, params["wv"], precision=hp) + params["bv"]

    def split(t):
        return t.reshape(B, S, HEADS, HEAD_DIM).transpose(0, 2, 1, 3)

    q, k, v = split(q), split(k), split(v)
    scores = jnp.einsum("bhqd,bhkd->bhqk", q, k, precision=hp) / math.sqrt(HEAD_DIM)
    scores = jnp.where(mask[None, None] == 0, -jnp.inf, scores)
    attn = jax.nn.softmax(scores, axis=-1)
    out = jnp.einsum("bhqk,bhkd->bhqd", attn, v, precision=hp)
    out = out.transpose(0, 2, 1, 3).reshape(B, S, E)
    return jnp.dot(out, params["wo"], precision=hp) + params["bo"]


if __name__ == "__main__":
    key = jax.random.PRNGKey(0)
    kx, kp, kx2 = jax.random.split(key, 3)

    params = init_params(kp, EMBED_SIZE)
    mask = jnp.tril(jnp.ones((SEQ_LENGTH, SEQ_LENGTH), jnp.float32))

    # Shape from the PyTorch spec: X = torch.rand((1, 5, 8)).
    x = jax.random.uniform(kx, (1, SEQ_LENGTH, EMBED_SIZE), jnp.float32)
    out = jax.block_until_ready(multi_head_attention(x, params, mask))
    ref = _reference(x, params, mask)
    assert out.shape == (1, SEQ_LENGTH, EMBED_SIZE)
    # Tolerance covers matmul-precision differences (reference vs MXU passes);
    # the approx-reciprocal softmax of the previous version is gone.
    assert jnp.allclose(out, ref, atol=1e-2, rtol=1e-2), (
        f"max abs diff = {jnp.max(jnp.abs(out - ref))}")

    # Extra coverage: batch of 2 — once with a 2-step grid (tile_b=1) and once
    # with both sequences in one tile (exercises the block-diagonal bias).
    x2 = jax.random.uniform(kx2, (2, SEQ_LENGTH, EMBED_SIZE), jnp.float32)
    ref2 = _reference(x2, params, mask)
    for tb in (1, 2):
        out2 = jax.block_until_ready(
            multi_head_attention(x2, params, mask, tile_b=tb))
        assert jnp.allclose(out2, ref2, atol=1e-2, rtol=1e-2), (
            f"tile_b={tb}: max abs diff = {jnp.max(jnp.abs(out2 - ref2))}")

    print("KERNEL_OK")
</pallas_src>

<mosaic_0001>
module attributes {stable_mosaic.version = 11 : i64} {
  func.func @_mha_kernel(%arg0: i32, %arg1: memref<8x8xf32, #tpu.memory_space<vmem>>, %arg2: memref<8x768xf32, #tpu.memory_space<vmem>>, %arg3: memref<1x768xf32, #tpu.memory_space<vmem>>, %arg4: memref<256x8xf32, #tpu.memory_space<vmem>>, %arg5: memref<1x8xf32, #tpu.memory_space<vmem>>, %arg6: memref<8x8xf32, #tpu.memory_space<vmem>>, %arg7: memref<8x8xf32, #tpu.memory_space<vmem>>) attributes {dimension_semantics = [#tpu.dimension_semantics<parallel>], iteration_bounds = array<i64: 1>, scalar_prefetch = 0 : i64, scratch_operands = 0 : i64, tpu.core_type = #tpu.core_type<tc>, window_params = [{transform_indices = @transform_0, window_bounds = array<i64: 8, 8>}, {pipeline_mode = #tpu.pipeline_mode<synchronous>, transform_indices = @transform_1, window_bounds = array<i64: 8, 768>}, {pipeline_mode = #tpu.pipeline_mode<synchronous>, transform_indices = @transform_2, window_bounds = array<i64: 1, 768>}, {pipeline_mode = #tpu.pipeline_mode<synchronous>, transform_indices = @transform_3, window_bounds = array<i64: 256, 8>}, {pipeline_mode = #tpu.pipeline_mode<synchronous>, transform_indices = @transform_4, window_bounds = array<i64: 1, 8>}, {pipeline_mode = #tpu.pipeline_mode<synchronous>, transform_indices = @transform_5, window_bounds = array<i64: 8, 8>}, {transform_indices = @transform_6, window_bounds = array<i64: 8, 8>}]} {
    %c0 = arith.constant 0 : index
    %c0_0 = arith.constant 0 : index
    %0 = vector.load %arg1[%c0, %c0_0] : memref<8x8xf32, #tpu.memory_space<vmem>>, vector<8x8xf32>
    %c0_1 = arith.constant 0 : index
    %c0_2 = arith.constant 0 : index
    %1 = vector.load %arg2[%c0_1, %c0_2] : memref<8x768xf32, #tpu.memory_space<vmem>>, vector<8x768xf32>
    %cst = arith.constant dense<0.000000e+00> : vector<8x768xf32>
    %2 = tpu.matmul %0, %1, %cst {dimension_numbers = #tpu.dot_dimension_numbers<[1], [0], [0], [1], [0, 0, 1, 1], [], []>} : vector<8x8xf32>, vector<8x768xf32>, vector<8x768xf32> -> vector<8x768xf32>
    %c0_3 = arith.constant 0 : index
    %c0_4 = arith.constant 0 : index
    %3 = vector.load %arg3[%c0_3, %c0_4] : memref<1x768xf32, #tpu.memory_space<vmem>>, vector<1x768xf32>
    %4 = vector.broadcast %3 : vector<1x768xf32> to vector<8x768xf32>
    %5 = arith.addf %2, %4 : vector<8x768xf32>
    %c0_5 = arith.constant 0 : index
    %c0_6 = arith.constant 0 : index
    %6 = vector.load %arg6[%c0_5, %c0_6] : memref<8x8xf32, #tpu.memory_space<vmem>>, vector<8x8xf32>
    %7 = vector.extract_strided_slice %5 {offsets = [0, 0], sizes = [8, 128], strides = [1, 1]} : vector<8x768xf32> to vector<8x128xf32>
    %8 = vector.extract_strided_slice %5 {offsets = [0, 256], sizes = [8, 128], strides = [1, 1]} : vector<8x768xf32> to vector<8x128xf32>
    %9 = vector.extract_strided_slice %5 {offsets = [0, 512], sizes = [8, 128], strides = [1, 1]} : vector<8x768xf32> to vector<8x128xf32>
    %cst_7 = arith.constant dense<0.000000e+00> : vector<8x8xf32>
    %10 = tpu.matmul %7, %8, %cst_7 {dimension_numbers = #tpu.dot_dimension_numbers<[1], [1], [0], [0], [0, 0, 1, 0], [], []>} : vector<8x128xf32>, vector<8x128xf32>, vector<8x8xf32> -> vector<8x8xf32>
    %11 = arith.addf %10, %6 : vector<8x8xf32>
    %cst_8 = arith.constant dense<0xFF800000> : vector<8xf32>
    %12 = vector.multi_reduction <maximumf>, %11, %cst_8 [1] : vector<8x8xf32> to vector<8xf32>
    %13 = vector.shape_cast %12 : vector<8xf32> to vector<8x1xf32>
    %14 = vector.broadcast %13 : vector<8x1xf32> to vector<8x8xf32>
    %15 = arith.subf %11, %14 : vector<8x8xf32>
    %16 = math.exp %15 : vector<8x8xf32>
    %cst_9 = arith.constant dense<0.000000e+00> : vector<8xf32>
    %17 = vector.multi_reduction <add>, %16, %cst_9 [1] : vector<8x8xf32> to vector<8xf32>
    %18 = vector.shape_cast %17 : vector<8xf32> to vector<8x1xf32>
    %19 = vector.broadcast %18 : vector<8x1xf32> to vector<8x8xf32>
    %20 = arith.divf %16, %19 : vector<8x8xf32>
    %cst_10 = arith.constant dense<0.000000e+00> : vector<8x128xf32>
    %21 = tpu.matmul %20, %9, %cst_10 {dimension_numbers = #tpu.dot_dimension_numbers<[1], [0], [0], [1], [0, 0, 1, 1], [], []>} : vector<8x8xf32>, vector<8x128xf32>, vector<8x128xf32> -> vector<8x128xf32>
    %22 = vector.extract_strided_slice %5 {offsets = [0, 128], sizes = [8, 128], strides = [1, 1]} : vector<8x768xf32> to vector<8x128xf32>
    %23 = vector.extract_strided_slice %5 {offsets = [0, 384], sizes = [8, 128], strides = [1, 1]} : vector<8x768xf32> to vector<8x128xf32>
    %24 = vector.extract_strided_slice %5 {offsets = [0, 640], sizes = [8, 128], strides = [1, 1]} : vector<8x768xf32> to vector<8x128xf32>
    %cst_11 = arith.constant dense<0.000000e+00> : vector<8x8xf32>
    %25 = tpu.matmul %22, %23, %cst_11 {dimension_numbers = #tpu.dot_dimension_numbers<[1], [1], [0], [0], [0, 0, 1, 0], [], []>} : vector<8x128xf32>, vector<8x128xf32>, vector<8x8xf32> -> vector<8x8xf32>
    %26 = arith.addf %25, %6 : vector<8x8xf32>
    %cst_12 = arith.constant dense<0xFF800000> : vector<8xf32>
    %27 = vector.multi_reduction <maximumf>, %26, %cst_12 [1] : vector<8x8xf32> to vector<8xf32>
    %28 = vector.shape_cast %27 : vector<8xf32> to vector<8x1xf32>
    %29 = vector.broadcast %28 : vector<8x1xf32> to vector<8x8xf32>
    %30 = arith.subf %26, %29 : vector<8x8xf32>
    %31 = math.exp %30 : vector<8x8xf32>
    %cst_13 = arith.constant dense<0.000000e+00> : vector<8xf32>
    %32 = vector.multi_reduction <add>, %31, %cst_13 [1] : vector<8x8xf32> to vector<8xf32>
    %33 = vector.shape_cast %32 : vector<8xf32> to vector<8x1xf32>
    %34 = vector.broadcast %33 : vector<8x1xf32> to vector<8x8xf32>
    %35 = arith.divf %31, %34 : vector<8x8xf32>
    %cst_14 = arith.constant dense<0.000000e+00> : vector<8x128xf32>
    %36 = tpu.matmul %35, %24, %cst_14 {dimension_numbers = #tpu.dot_dimension_numbers<[1], [0], [0], [1], [0, 0, 1, 1], [], []>} : vector<8x8xf32>, vector<8x128xf32>, vector<8x128xf32> -> vector<8x128xf32>
    %37 = tpu.concatenate %21, %36 in 1 : vector<8x128xf32>, vector<8x128xf32> -> vector<8x256xf32>
    %c0_15 = arith.constant 0 : index
    %c0_16 = arith.constant 0 : index
    %38 = vector.load %arg4[%c0_15, %c0_16] : memref<256x8xf32, #tpu.memory_space<vmem>>, vector<256x8xf32>
    %cst_17 = arith.constant dense<0.000000e+00> : vector<8x8xf32>
    %39 = tpu.matmul %37, %38, %cst_17 {dimension_numbers = #tpu.dot_dimension_numbers<[1], [0], [0], [1], [0, 0, 1, 1], [], []>} : vector<8x256xf32>, vector<256x8xf32>, vector<8x8xf32> -> vector<8x8xf32>
    %c0_18 = arith.constant 0 : index
    %c0_19 = arith.constant 0 : index
    %40 = vector.load %arg5[%c0_18, %c0_19] : memref<1x8xf32, #tpu.memory_space<vmem>>, vector<1x8xf32>
    %41 = vector.broadcast %40 : vector<1x8xf32> to vector<8x8xf32>
    %42 = arith.addf %39, %41 : vector<8x8xf32>
    %c0_20 = arith.constant 0 : index
    %c0_21 = arith.constant 0 : index
    %43 = vector.load %arg7[%c0_20, %c0_21] : memref<8x8xf32, #tpu.memory_space<vmem>>, vector<8x8xf32>
    tpu.vector_store %arg7[%c0_20, %c0_21], %42 {strides = array<i32>} : memref<8x8xf32, #tpu.memory_space<vmem>>, vector<8x8xf32>,
    return
  }
  func.func @transform_0(%arg0: i32) -> (i32, i32) {
    %c0_i32 = arith.constant 0 : i32
    %c0_i32_0 = arith.constant 0 : i32
    return %arg0, %c0_i32 : i32, i32
  }
  func.func @transform_1(%arg0: i32) -> (i32, i32) {
    %c0_i32 = arith.constant 0 : i32
    %c0_i32_0 = arith.constant 0 : i32
    %c0_i32_1 = arith.constant 0 : i32
    return %c0_i32, %c0_i32_0 : i32, i32
  }
  func.func @transform_2(%arg0: i32) -> (i32, i32) {
    %c0_i32 = arith.constant 0 : i32
    %c0_i32_0 = arith.constant 0 : i32
    %c0_i32_1 = arith.constant 0 : i32
    return %c0_i32, %c0_i32_0 : i32, i32
  }
  func.func @transform_3(%arg0: i32) -> (i32, i32) {
    %c0_i32 = arith.constant 0 : i32
    %c0_i32_0 = arith.constant 0 : i32
    %c0_i32_1 = arith.constant 0 : i32
    return %c0_i32, %c0_i32_0 : i32, i32
  }
  func.func @transform_4(%arg0: i32) -> (i32, i32) {
    %c0_i32 = arith.constant 0 : i32
    %c0_i32_0 = arith.constant 0 : i32
    %c0_i32_1 = arith.constant 0 : i32
    return %c0_i32, %c0_i32_0 : i32, i32
  }
  func.func @transform_5(%arg0: i32) -> (i32, i32) {
    %c0_i32 = arith.constant 0 : i32
    %c0_i32_0 = arith.constant 0 : i32
    %c0_i32_1 = arith.constant 0 : i32
    return %c0_i32, %c0_i32_0 : i32, i32
  }
  func.func @transform_6(%arg0: i32) -> (i32, i32) {
    %c0_i32 = arith.constant 0 : i32
    %c0_i32_0 = arith.constant 0 : i32
    return %arg0, %c0_i32 : i32, i32
  }
}

</mosaic_0001>

<llo_original>
// kernel: tpu_custom_call.1
$region0: #{tpu_custom_call.1}
  #allocation0 [shape = 'u32[]', space=smem, size = 0x4, offset = 0x4, fixed_abs, tag = 'smem constant byte address 0x4 - core index']
  #allocation1 [shape = 'u32[144,128]{1,0:T(1,128)}', space=vmem, size = 0x12000, scoped, tag = 'internal scratch']
  %s0 = inlined_call_operand.vmem [shape: f32[8,8], index: 0, kind: input, shape index: {}]
  %s1 = inlined_call_operand.vmem [shape: f32[8,768], index: 1, kind: input, shape index: {}]
  %s2 = inlined_call_operand.vmem [shape: f32[1,768], index: 2, kind: input, shape index: {}]
  %s3 = inlined_call_operand.vmem [shape: f32[256,8], index: 3, kind: input, shape index: {}]
  %s4 = inlined_call_operand.vmem [shape: f32[1,8], index: 4, kind: input, shape index: {}]
  %s5 = inlined_call_operand.vmem [shape: f32[8,8], index: 5, kind: input, shape index: {}]
  %s6 = inlined_call_operand.hbm [shape: f32[8,8], index: 6, kind: output, shape index: {}]
  %s7 = sld [smem:[#allocation0]]
  $region34: #{tpu_custom_call.1} parent=0
    _
  %s9 = ssub.s32 1, %s7
  %s10 = scalar_select 0, %s9, %s7
  $region1: #{tpu_custom_call.1} parent=0
    #allocation2 [shape = 'u8[4096]{0}', space=vmem, size = 0x1000, scoped, tag = 'output window, operand 0, single buffered']
    #allocation3 [shape = 's32[1]{0}', space=sflag, size = 0x4, scoped, tag = 'scoped memory for tpu_custom_call.1']
    %11 = vsyncpa [#allocation3], 0
    // Predicated region
    $region2: #{tpu_custom_call.1} parent=1 // pred_check
      _
    $region3: #{tpu_custom_call.1} parent=1 // pred_check_branch
      %13 = sbr.rel (0) target = $region5
    $region4: #{tpu_custom_call.1} parent=1 // pred_region
      _
    $region5: #{tpu_custom_call.1} parent=1 // pred_fallthru
      _
    // Predicated region
    $region6: #{tpu_custom_call.1} parent=1 // pred_check
      _
    $region7: #{tpu_custom_call.1} parent=1 // pred_check_branch
      %15 = sbr.rel (0) target = $region9
    $region8: #{tpu_custom_call.1} parent=1 // pred_region
      _
    $region9: #{tpu_custom_call.1} parent=1 // pred_fallthru
      _
    // Predicated region
    $region10: #{tpu_custom_call.1} parent=1 // pred_check
      _
    $region11: #{tpu_custom_call.1} parent=1 // pred_check_branch
      %17 = sbr.rel (0) target = $region13
    $region12: #{tpu_custom_call.1} parent=1 // pred_region
      _
    $region13: #{tpu_custom_call.1} parent=1 // pred_fallthru
      _
    // Predicated region
    $region14: #{tpu_custom_call.1} parent=1 // pred_check
      _
    $region15: #{tpu_custom_call.1} parent=1 // pred_check_branch
      %19 = sbr.rel (0) target = $region17
    $region16: #{tpu_custom_call.1} parent=1 // pred_region
      _
    $region17: #{tpu_custom_call.1} parent=1 // pred_fallthru
      _
    // Predicated region
    $region18: #{tpu_custom_call.1} parent=1 // pred_check
      _
    $region19: #{tpu_custom_call.1} parent=1 // pred_check_branch
      %21 = sbr.rel (0) target = $region21
    $region20: #{tpu_custom_call.1} parent=1 // pred_region
      _
    $region21: #{tpu_custom_call.1} parent=1 // pred_fallthru
      _
    // Predicated region
    $region22: #{tpu_custom_call.1} parent=1 // pred_check
      _
    $region23: #{tpu_custom_call.1} parent=1 // pred_check_branch
      %23 = sbr.rel (0) target = $region25
    $region24: #{tpu_custom_call.1} parent=1 // pred_region
      _
    $region25: #{tpu_custom_call.1} parent=1 // pred_fallthru
      _
    %v24 = vld [vmem:[%s0] sm:$0xff]
    %v25 = vld [vmem:[%s1] sm:$0xff]
    %v26 = vld [vmem:[%s1 + $0x8] sm:$0xff]
    %v27 = vld [vmem:[%s1 + $0x10] sm:$0xff]
    %v28 = vld [vmem:[%s1 + $0x18] sm:$0xff]
    %v29 = vld [vmem:[%s1 + $0x20] sm:$0xff]
    %v30 = vld [vmem:[%s1 + $0x28] sm:$0xff]
    %v31 = vld [vmem:[%s2] sm:$0x3f]
    %v33 = vlaneseq
    %v34 = vshrl.u32 %v33, 7
    %v35 = vsub.s32 0, %v34
    %v36 = vrot.slane %v31, %v35
    %v37 = vlaneseq
    %v38 = vshrl.u32 %v37, 7
    %v39 = vsub.s32 1, %v38
    %v40 = vrot.slane %v31, %v39
    %v41 = vlaneseq
    %v42 = vshrl.u32 %v41, 7
    %v43 = vsub.s32 2, %v42
    %v44 = vrot.slane %v31, %v43
    %v45 = vlaneseq
    %v46 = vshrl.u32 %v45, 7
    %v47 = vsub.s32 3, %v46
    %v48 = vrot.slane %v31, %v47
    %v49 = vlaneseq
    %v50 = vshrl.u32 %v49, 7
    %v51 = vsub.s32 4, %v50
    %v52 = vrot.slane %v31, %v51
    %v53 = vlaneseq
    %v54 = vshrl.u32 %v53, 7
    %v55 = vsub.s32 5, %v54
    %v56 = vrot.slane %v31, %v55
    %vm63 = vcmask 64512
    %v65 = vsel %vm63, %v24, 0
    %67 = vmatprep.subr.mxu0 %v26
    %68 = vmatpush1.msra.mxu0 %v25
    %69 = vmatprep.subr.mxu0 0.0
    %70 = vmatpush1.msra.mxu0 0.0
    %71 = vmatprep.subr.mxu0 0.0
    %72 = vmatpush1.msra.mxu0 0.0
    %73 = vmatprep.subr.mxu0 0.0
    %74 = vmatpush1.msra.mxu0 0.0
    %75 = vmatprep.subr.mxu0 0.0
    %76 = vmatpush1.msra.mxu0 0.0
    %77 = vmatprep.subr.mxu0 0.0
    %78 = vmatpush1.msra.mxu0 0.0
    %79 = vmatprep.subr.mxu0 0.0
    %80 = vmatpush1.msra.mxu0 0.0
    %81 = vmatprep.subr.mxu0 0.0
    %82 = vmatpush1.msra.mxu0 0.0
    %83 = vmatprep.subr.mxu0 0.0
    %84 = vmatpush1.msra.mxu0 0.0
    %85 = vmatprep.subr.mxu0 0.0
    %86 = vmatpush1.msra.mxu0 0.0
    %87 = vmatprep.subr.mxu0 0.0
    %88 = vmatpush1.msra.mxu0 0.0
    %89 = vmatprep.subr.mxu0 0.0
    %90 = vmatpush1.msra.mxu0 0.0
    %91 = vmatprep.subr.mxu0 0.0
    %92 = vmatpush1.msra.mxu0 0.0
    %93 = vmatprep.subr.mxu0 0.0
    %94 = vmatpush1.msra.mxu0 0.0
    %95 = vmatprep.subr.mxu0 0.0
    %96 = vmatpush1.msra.mxu0 0.0
    %97 = vmatprep.subr.mxu0 0.0
    %98 = vmatpush1.msra.mxu0 0.0
    %99 = vmatprep.subr.mxu0 0.0
    %100 = vmatpush1.msra.mxu0 0.0
    %101 = vmatprep.subr.mxu0 0.0
    %102 = vmatpush1.msra.mxu0 0.0
    %103 = vmatprep.subr.mxu0 0.0
    %104 = vmatpush1.msra.mxu0 0.0
    %105 = vmatprep.subr.mxu0 0.0
    %106 = vmatpush1.msra.mxu0 0.0
    %107 = vmatprep.subr.mxu0 0.0
    %108 = vmatpush1.msra.mxu0 0.0
    %109 = vmatprep.subr.mxu0 0.0
    %110 = vmatpush1.msra.mxu0 0.0
    %111 = vmatprep.subr.mxu0 0.0
    %112 = vmatpush1.msra.mxu0 0.0
    %113 = vmatprep.subr.mxu0 0.0
    %114 = vmatpush1.msra.mxu0 0.0
    %115 = vmatprep.subr.mxu0 0.0
    %116 = vmatpush1.msra.mxu0 0.0
    %117 = vmatprep.subr.mxu0 0.0
    %118 = vmatpush1.msra.mxu0 0.0
    %119 = vmatprep.subr.mxu0 0.0
    %120 = vmatpush1.msra.mxu0 0.0
    %121 = vmatprep.subr.mxu0 0.0
    %122 = vmatpush1.msra.mxu0 0.0
    %123 = vmatprep.subr.mxu0 0.0
    %124 = vmatpush1.msra.mxu0 0.0
    %125 = vmatprep.subr.mxu0 0.0
    %126 = vmatpush1.msra.mxu0 0.0
    %127 = vmatprep.subr.mxu0 0.0
    %128 = vmatpush1.msra.mxu0 0.0
    %129 = vmatprep.subr.mxu0 0.0
    %130 = vmatpush1.msra.mxu0 0.0
    %131 = vmatprep.mubr.f32.mxu0 0.0
    %132 = vmatmul.mubr.f32.gmra.mrb[0].mxu0 %v65
    %v133 = vpop.f32.mrb[0].mxu0
    %v134 = vadd.f32 %v36, %v133
    %v135 = vpop.f32.mrb[0].mxu0
    %v136 = vadd.f32 %v40, %v135
    %137 = vdwg.mxu0
    %138 = vmatprep.subr.mxu0 %v28
    %139 = vmatpush1.msra.mxu0 %v27
    %140 = vmatprep.subr.mxu0 0.0
    %141 = vmatpush1.msra.mxu0 0.0
    %142 = vmatprep.subr.mxu0 0.0
    %143 = vmatpush1.msra.mxu0 0.0
    %144 = vmatprep.subr.mxu0 0.0
    %145 = vmatpush1.msra.mxu0 0.0
    %146 = vmatprep.subr.mxu0 0.0
    %147 = vmatpush1.msra.mxu0 0.0
    %148 = vmatprep.subr.mxu0 0.0
    %149 = vmatpush1.msra.mxu0 0.0
    %150 = vmatprep.subr.mxu0 0.0
    %151 = vmatpush1.msra.mxu0 0.0
    %152 = vmatprep.subr.mxu0 0.0
    %153 = vmatpush1.msra.mxu0 0.0
    %154 = vmatprep.subr.mxu0 0.0
    %155 = vmatpush1.msra.mxu0 0.0
    %156 = vmatprep.subr.mxu0 0.0
    %157 = vmatpush1.msra.mxu0 0.0
    %158 = vmatprep.subr.mxu0 0.0
    %159 = vmatpush1.msra.mxu0 0.0
    %160 = vmatprep.subr.mxu0 0.0
    %161 = vmatpush1.msra.mxu0 0.0
    %162 = vmatprep.subr.mxu0 0.0
    %163 = vmatpush1.msra.mxu0 0.0
    %164 = vmatprep.subr.mxu0 0.0
    %165 = vmatpush1.msra.mxu0 0.0
    %166 = vmatprep.subr.mxu0 0.0
    %167 = vmatpush1.msra.mxu0 0.0
    %168 = vmatprep.subr.mxu0 0.0
    %169 = vmatpush1.msra.mxu0 0.0
    %170 = vmatprep.subr.mxu0 0.0
    %171 = vmatpush1.msra.mxu0 0.0
    %172 = vmatprep.subr.mxu0 0.0
    %173 = vmatpush1.msra.mxu0 0.0
    %174 = vmatprep.subr.mxu0 0.0
    %175 = vmatpush1.msra.mxu0 0.0
    %176 = vmatprep.subr.mxu0 0.0
    %177 = vmatpush1.msra.mxu0 0.0
    %178 = vmatprep.subr.mxu0 0.0
    %179 = vmatpush1.msra.mxu0 0.0
    %180 = vmatprep.subr.mxu0 0.0
    %181 = vmatpush1.msra.mxu0 0.0
    %182 = vmatprep.subr.mxu0 0.0
    %183 = vmatpush1.msra.mxu0 0.0
    %184 = vmatprep.subr.mxu0 0.0
    %185 = vmatpush1.msra.mxu0 0.0
    %186 = vmatprep.subr.mxu0 0.0
    %187 = vmatpush1.msra.mxu0 0.0
    %188 = vmatprep.subr.mxu0 0.0
    %189 = vmatpush1.msra.mxu0 0.0
    %190 = vmatprep.subr.mxu0 0.0
    %191 = vmatpush1.msra.mxu0 0.0
    %192 = vmatprep.subr.mxu0 0.0
    %193 = vmatpush1.msra.mxu0 0.0
    %194 = vmatprep.subr.mxu0 0.0
    %195 = vmatpush1.msra.mxu0 0.0
    %196 = vmatprep.subr.mxu0 0.0
    %197 = vmatpush1.msra.mxu0 0.0
    %198 = vmatprep.subr.mxu0 0.0
    %199 = vmatpush1.msra.mxu0 0.0
    %200 = vmatprep.subr.mxu0 0.0
    %201 = vmatpush1.msra.mxu0 0.0
    %202 = vmatprep.mubr.f32.mxu0 0.0
    %203 = vmatmul.mubr.f32.gmra.mrb[0].mxu0 %v65
    %v204 = vpop.f32.mrb[0].mxu0
    %v205 = vadd.f32 %v44, %v204
    %v206 = vpop.f32.mrb[0].mxu0
    %v207 = vadd.f32 %v48, %v206
    %208 = vdwg.mxu0
    %209 = vmatprep.subr.mxu0 %v30
    %210 = vmatpush1.msra.mxu0 %v29
    %211 = vmatprep.subr.mxu0 0.0
    %212 = vmatpush1.msra.mxu0 0.0
    %213 = vmatprep.subr.mxu0 0.0
    %214 = vmatpush1.msra.mxu0 0.0
    %215 = vmatprep.subr.mxu0 0.0
    %216 = vmatpush1.msra.mxu0 0.0
    %217 = vmatprep.subr.mxu0 0.0
    %218 = vmatpush1.msra.mxu0 0.0
    %219 = vmatprep.subr.mxu0 0.0
    %220 = vmatpush1.msra.mxu0 0.0
    %221 = vmatprep.subr.mxu0 0.0
    %222 = vmatpush1.msra.mxu0 0.0
    %223 = vmatprep.subr.mxu0 0.0
    %224 = vmatpush1.msra.mxu0 0.0
    %225 = vmatprep.subr.mxu0 0.0
    %226 = vmatpush1.msra.mxu0 0.0
    %227 = vmatprep.subr.mxu0 0.0
    %228 = vmatpush1.msra.mxu0 0.0
    %229 = vmatprep.subr.mxu0 0.0
    %230 = vmatpush1.msra.mxu0 0.0
    %231 = vmatprep.subr.mxu0 0.0
    %232 = vmatpush1.msra.mxu0 0.0
    %233 = vmatprep.subr.mxu0 0.0
    %234 = vmatpush1.msra.mxu0 0.0
    %235 = vmatprep.subr.mxu0 0.0
    %236 = vmatpush1.msra.mxu0 0.0
    %237 = vmatprep.subr.mxu0 0.0
    %238 = vmatpush1.msra.mxu0 0.0
    %239 = vmatprep.subr.mxu0 0.0
    %240 = vmatpush1.msra.mxu0 0.0
    %241 = vmatprep.subr.mxu0 0.0
    %242 = vmatpush1.msra.mxu0 0.0
    %243 = vmatprep.subr.mxu0 0.0
    %244 = vmatpush1.msra.mxu0 0.0
    %245 = vmatprep.subr.mxu0 0.0
    %246 = vmatpush1.msra.mxu0 0.0
    %247 = vmatprep.subr.mxu0 0.0
    %248 = vmatpush1.msra.mxu0 0.0
    %249 = vmatprep.subr.mxu0 0.0
    %250 = vmatpush1.msra.mxu0 0.0
    %251 = vmatprep.subr.mxu0 0.0
    %252 = vmatpush1.msra.mxu0 0.0
    %253 = vmatprep.subr.mxu0 0.0
    %254 = vmatpush1.msra.mxu0 0.0
    %255 = vmatprep.subr.mxu0 0.0
    %256 = vmatpush1.msra.mxu0 0.0
    %257 = vmatprep.subr.mxu0 0.0
    %258 = vmatpush1.msra.mxu0 0.0
    %259 = vmatprep.subr.mxu0 0.0
    %260 = vmatpush1.msra.mxu0 0.0
    %261 = vmatprep.subr.mxu0 0.0
    %262 = vmatpush1.msra.mxu0 0.0
    %263 = vmatprep.subr.mxu0 0.0
    %264 = vmatpush1.msra.mxu0 0.0
    %265 = vmatprep.subr.mxu0 0.0
    %266 = vmatpush1.msra.mxu0 0.0
    %267 = vmatprep.subr.mxu0 0.0
    %268 = vmatpush1.msra.mxu0 0.0
    %269 = vmatprep.subr.mxu0 0.0
    %270 = vmatpush1.msra.mxu0 0.0
    %271 = vmatprep.subr.mxu0 0.0
    %272 = vmatpush1.msra.mxu0 0.0
    %273 = vmatprep.mubr.f32.mxu0 0.0
    %274 = vmatmul.mubr.f32.gmra.mrb[0].mxu0 %v65
    %v275 = vpop.f32.mrb[0].mxu0
    %v276 = vadd.f32 %v52, %v275
    %v277 = vpop.f32.mrb[0].mxu0
    %v278 = vadd.f32 %v56, %v277
    %279 = vdwg.mxu0
    %v280 = vld [vmem:[%s5] sm:$0xff]
    %281 = vmatprep.subr.mxu0 0.0
    %282 = vmatpush1.xpose.msra.mxu0 %v205
    %283 = vmatprep.subr.mxu0 0.0
    %284 = vmatpush1.xpose.msra.mxu0 0.0
    %285 = vmatprep.subr.mxu0 0.0
    %286 = vmatpush1.xpose.msra.mxu0 0.0
    %287 = vmatprep.subr.mxu0 0.0
    %288 = vmatpush1.xpose.msra.mxu0 0.0
    %289 = vmatprep.subr.mxu0 0.0
    %290 = vmatpush1.xpose.msra.mxu0 0.0
    %291 = vmatprep.subr.mxu0 0.0
    %292 = vmatpush1.xpose.msra.mxu0 0.0
    %293 = vmatprep.subr.mxu0 0.0
    %294 = vmatpush1.xpose.msra.mxu0 0.0
    %295 = vmatprep.subr.mxu0 0.0
    %296 = vmatpush1.xpose.msra.mxu0 0.0
    %297 = vmatprep.subr.mxu0 0.0
    %298 = vmatpush1.xpose.msra.mxu0 0.0
    %299 = vmatprep.subr.mxu0 0.0
    %300 = vmatpush1.xpose.msra.mxu0 0.0
    %301 = vmatprep.subr.mxu0 0.0
    %302 = vmatpush1.xpose.msra.mxu0 0.0
    %303 = vmatprep.subr.mxu0 0.0
    %304 = vmatpush1.xpose.msra.mxu0 0.0
    %305 = vmatprep.subr.mxu0 0.0
    %306 = vmatpush1.xpose.msra.mxu0 0.0
    %307 = vmatprep.subr.mxu0 0.0
    %308 = vmatpush1.xpose.msra.mxu0 0.0
    %309 = vmatprep.subr.mxu0 0.0
    %310 = vmatpush1.xpose.msra.mxu0 0.0
    %311 = vmatprep.subr.mxu0 0.0
    %312 = vmatpush1.xpose.msra.mxu0 0.0
    %313 = vmatprep.subr.mxu0 0.0
    %314 = vmatpush1.xpose.msra.mxu0 0.0
    %315 = vmatprep.subr.mxu0 0.0
    %316 = vmatpush1.xpose.msra.mxu0 0.0
    %317 = vmatprep.subr.mxu0 0.0
    %318 = vmatpush1.xpose.msra.mxu0 0.0
    %319 = vmatprep.subr.mxu0 0.0
    %320 = vmatpush1.xpose.msra.mxu0 0.0
    %321 = vmatprep.subr.mxu0 0.0
    %322 = vmatpush1.xpose.msra.mxu0 0.0
    %323 = vmatprep.subr.mxu0 0.0
    %324 = vmatpush1.xpose.msra.mxu0 0.0
    %325 = vmatprep.subr.mxu0 0.0
    %326 = vmatpush1.xpose.msra.mxu0 0.0
    %327 = vmatprep.subr.mxu0 0.0
    %328 = vmatpush1.xpose.msra.mxu0 0.0
    %329 = vmatprep.subr.mxu0 0.0
    %330 = vmatpush1.xpose.msra.mxu0 0.0
    %331 = vmatprep.subr.mxu0 0.0
    %332 = vmatpush1.xpose.msra.mxu0 0.0
    %333 = vmatprep.subr.mxu0 0.0
    %334 = vmatpush1.xpose.msra.mxu0 0.0
    %335 = vmatprep.subr.mxu0 0.0
    %336 = vmatpush1.xpose.msra.mxu0 0.0
    %337 = vmatprep.subr.mxu0 0.0
    %338 = vmatpush1.xpose.msra.mxu0 0.0
    %339 = vmatprep.subr.mxu0 0.0
    %340 = vmatpush1.xpose.msra.mxu0 0.0
    %341 = vmatprep.subr.mxu0 0.0
    %342 = vmatpush1.xpose.msra.mxu0 0.0
    %343 = vmatprep.subr.mxu0 0.0
    %344 = vmatpush1.xpose.msra.mxu0 0.0
    %345 = vmatprep.mubr.f32.mxu0 0.0
    %346 = vmatmul.mubr.f32.gmra.mrb[0].mxu0 %v134
    %v347 = vpop.f32.mrb[0].mxu0
    %v348 = vadd.f32 %v280, %v347
    %v349 = vpop.f32.mrb[0].mxu0
    %350 = vdwg.mxu0
    %v351 = vsel %vm63, %v348, -inf
    %352 = vmax.xlane.f32.xlu0 %v351
    %v353 = vpop.xlane.xlu0 %352
    %v354 = vsub.f32 %v348, %v353
    %v355 = vmul.f32 %v354, 1.442695
    %v356 = vpow.pop %v355
    %v357 = vsel %vm63, %v356, 0.0
    %358 = vadd.xlane.f32.xlu0 %v357
    %v359 = vpop.xlane.xlu0 %358
    %v360 = vrcp.pop %v359
    %v361 = vmul.f32 %v356, %v360
    %v363 = vsel %vm63, %v361, 0
    %365 = vmatprep.subr.mxu0 0.0
    %366 = vmatpush1.msra.mxu0 %v276
    %367 = vmatprep.subr.mxu0 0.0
    %368 = vmatpush1.msra.mxu0 0.0
    %369 = vmatprep.subr.mxu0 0.0
    %370 = vmatpush1.msra.mxu0 0.0
    %371 = vmatprep.subr.mxu0 0.0
    %372 = vmatpush1.msra.mxu0 0.0
    %373 = vmatprep.subr.mxu0 0.0
    %374 = vmatpush1.msra.mxu0 0.0
    %375 = vmatprep.subr.mxu0 0.0
    %376 = vmatpush1.msra.mxu0 0.0
    %377 = vmatprep.subr.mxu0 0.0
    %378 = vmatpush1.msra.mxu0 0.0
    %379 = vmatprep.subr.mxu0 0.0
    %380 = vmatpush1.msra.mxu0 0.0
    %381 = vmatprep.subr.mxu0 0.0
    %382 = vmatpush1.msra.mxu0 0.0
    %383 = vmatprep.subr.mxu0 0.0
    %384 = vmatpush1.msra.mxu0 0.0
    %385 = vmatprep.subr.mxu0 0.0
    %386 = vmatpush1.msra.mxu0 0.0
    %387 = vmatprep.subr.mxu0 0.0
    %388 = vmatpush1.msra.mxu0 0.0
    %389 = vmatprep.subr.mxu0 0.0
    %390 = vmatpush1.msra.mxu0 0.0
    %391 = vmatprep.subr.mxu0 0.0
    %392 = vmatpush1.msra.mxu0 0.0
    %393 = vmatprep.subr.mxu0 0.0
    %394 = vmatpush1.msra.mxu0 0.0
    %395 = vmatprep.subr.mxu0 0.0
    %396 = vmatpush1.msra.mxu0 0.0
    %397 = vmatprep.subr.mxu0 0.0
    %398 = vmatpush1.msra.mxu0 0.0
    %399 = vmatprep.subr.mxu0 0.0
    %400 = vmatpush1.msra.mxu0 0.0
    %401 = vmatprep.subr.mxu0 0.0
    %402 = vmatpush1.msra.mxu0 0.0
    %403 = vmatprep.subr.mxu0 0.0
    %404 = vmatpush1.msra.mxu0 0.0
    %405 = vmatprep.subr.mxu0 0.0
    %406 = vmatpush1.msra.mxu0 0.0
    %407 = vmatprep.subr.mxu0 0.0
    %408 = vmatpush1.msra.mxu0 0.0
    %409 = vmatprep.subr.mxu0 0.0
    %410 = vmatpush1.msra.mxu0 0.0
    %411 = vmatprep.subr.mxu0 0.0
    %412 = vmatpush1.msra.mxu0 0.0
    %413 = vmatprep.subr.mxu0 0.0
    %414 = vmatpush1.msra.mxu0 0.0
    %415 = vmatprep.subr.mxu0 0.0
    %416 = vmatpush1.msra.mxu0 0.0
    %417 = vmatprep.subr.mxu0 0.0
    %418 = vmatpush1.msra.mxu0 0.0
    %419 = vmatprep.subr.mxu0 0.0
    %420 = vmatpush1.msra.mxu0 0.0
    %421 = vmatprep.subr.mxu0 0.0
    %422 = vmatpush1.msra.mxu0 0.0
    %423 = vmatprep.subr.mxu0 0.0
    %424 = vmatpush1.msra.mxu0 0.0
    %425 = vmatprep.subr.mxu0 0.0
    %426 = vmatpush1.msra.mxu0 0.0
    %427 = vmatprep.subr.mxu0 0.0
    %428 = vmatpush1.msra.mxu0 0.0
    %429 = vmatprep.mubr.f32.mxu0 0.0
    %430 = vmatmul.mubr.f32.gmra.mrb[0].mxu0 %v363
    %v431 = vpop.f32.mrb[0].mxu0
    %v432 = vadd.f32 0.0, %v431
    %v433 = vpop.f32.mrb[0].mxu0
    %434 = vdwg.mxu0
    %435 = vmatprep.subr.mxu0 0.0
    %436 = vmatpush1.xpose.msra.mxu0 %v207
    %437 = vmatprep.subr.mxu0 0.0
    %438 = vmatpush1.xpose.msra.mxu0 0.0
    %439 = vmatprep.subr.mxu0 0.0
    %440 = vmatpush1.xpose.msra.mxu0 0.0
    %441 = vmatprep.subr.mxu0 0.0
    %442 = vmatpush1.xpose.msra.mxu0 0.0
    %443 = vmatprep.subr.mxu0 0.0
    %444 = vmatpush1.xpose.msra.mxu0 0.0
    %445 = vmatprep.subr.mxu0 0.0
    %446 = vmatpush1.xpose.msra.mxu0 0.0
    %447 = vmatprep.subr.mxu0 0.0
    %448 = vmatpush1.xpose.msra.mxu0 0.0
    %449 = vmatprep.subr.mxu0 0.0
    %450 = vmatpush1.xpose.msra.mxu0 0.0
    %451 = vmatprep.subr.mxu0 0.0
    %452 = vmatpush1.xpose.msra.mxu0 0.0
    %453 = vmatprep.subr.mxu0 0.0
    %454 = vmatpush1.xpose.msra.mxu0 0.0
    %455 = vmatprep.subr.mxu0 0.0
    %456 = vmatpush1.xpose.msra.mxu0 0.0
    %457 = vmatprep.subr.mxu0 0.0
    %458 = vmatpush1.xpose.msra.mxu0 0.0
    %459 = vmatprep.subr.mxu0 0.0
    %460 = vmatpush1.xpose.msra.mxu0 0.0
    %461 = vmatprep.subr.mxu0 0.0
    %462 = vmatpush1.xpose.msra.mxu0 0.0
    %463 = vmatprep.subr.mxu0 0.0
    %464 = vmatpush1.xpose.msra.mxu0 0.0
    %465 = vmatprep.subr.mxu0 0.0
    %466 = vmatpush1.xpose.msra.mxu0 0.0
    %467 = vmatprep.subr.mxu0 0.0
    %468 = vmatpush1.xpose.msra.mxu0 0.0
    %469 = vmatprep.subr.mxu0 0.0
    %470 = vmatpush1.xpose.msra.mxu0 0.0
    %471 = vmatprep.subr.mxu0 0.0
    %472 = vmatpush1.xpose.msra.mxu0 0.0
    %473 = vmatprep.subr.mxu0 0.0
    %474 = vmatpush1.xpose.msra.mxu0 0.0
    %475 = vmatprep.subr.mxu0 0.0
    %476 = vmatpush1.xpose.msra.mxu0 0.0
    %477 = vmatprep.subr.mxu0 0.0
    %478 = vmatpush1.xpose.msra.mxu0 0.0
    %479 = vmatprep.subr.mxu0 0.0
    %480 = vmatpush1.xpose.msra.mxu0 0.0
    %481 = vmatprep.subr.mxu0 0.0
    %482 = vmatpush1.xpose.msra.mxu0 0.0
    %483 = vmatprep.subr.mxu0 0.0
    %484 = vmatpush1.xpose.msra.mxu0 0.0
    %485 = vmatprep.subr.mxu0 0.0
    %486 = vmatpush1.xpose.msra.mxu0 0.0
    %487 = vmatprep.subr.mxu0 0.0
    %488 = vmatpush1.xpose.msra.mxu0 0.0
    %489 = vmatprep.subr.mxu0 0.0
    %490 = vmatpush1.xpose.msra.mxu0 0.0
    %491 = vmatprep.subr.mxu0 0.0
    %492 = vmatpush1.xpose.msra.mxu0 0.0
    %493 = vmatprep.subr.mxu0 0.0
    %494 = vmatpush1.xpose.msra.mxu0 0.0
    %495 = vmatprep.subr.mxu0 0.0
    %496 = vmatpush1.xpose.msra.mxu0 0.0
    %497 = vmatprep.subr.mxu0 0.0
    %498 = vmatpush1.xpose.msra.mxu0 0.0
    %499 = vmatprep.mubr.f32.mxu0 0.0
    %500 = vmatmul.mubr.f32.gmra.mrb[0].mxu0 %v136
    %v501 = vpop.f32.mrb[0].mxu0
    %v502 = vadd.f32 %v280, %v501
    %v503 = vpop.f32.mrb[0].mxu0
    %504 = vdwg.mxu0
    %v505 = vsel %vm63, %v502, -inf
    %506 = vmax.xlane.f32.xlu0 %v505
    %v507 = vpop.xlane.xlu0 %506
    %v508 = vsub.f32 %v502, %v507
    %v509 = vmul.f32 %v508, 1.442695
    %v510 = vpow.pop %v509
    %v511 = vsel %vm63, %v510, 0.0
    %512 = vadd.xlane.f32.xlu0 %v511
    %v513 = vpop.xlane.xlu0 %512
    %v514 = vrcp.pop %v513
    %v515 = vmul.f32 %v510, %v514
    %v517 = vsel %vm63, %v515, 0
    %519 = vmatprep.subr.mxu0 0.0
    %520 = vmatpush1.msra.mxu0 %v278
    %521 = vmatprep.subr.mxu0 0.0
    %522 = vmatpush1.msra.mxu0 0.0
    %523 = vmatprep.subr.mxu0 0.0
    %524 = vmatpush1.msra.mxu0 0.0
    %525 = vmatprep.subr.mxu0 0.0
    %526 = vmatpush1.msra.mxu0 0.0
    %527 = vmatprep.subr.mxu0 0.0
    %528 = vmatpush1.msra.mxu0 0.0
    %529 = vmatprep.subr.mxu0 0.0
    %530 = vmatpush1.msra.mxu0 0.0
    %531 = vmatprep.subr.mxu0 0.0
    %532 = vmatpush1.msra.mxu0 0.0
    %533 = vmatprep.subr.mxu0 0.0
    %534 = vmatpush1.msra.mxu0 0.0
    %535 = vmatprep.subr.mxu0 0.0
    %536 = vmatpush1.msra.mxu0 0.0
    %537 = vmatprep.subr.mxu0 0.0
    %538 = vmatpush1.msra.mxu0 0.0
    %539 = vmatprep.subr.mxu0 0.0
    %540 = vmatpush1.msra.mxu0 0.0
    %541 = vmatprep.subr.mxu0 0.0
    %542 = vmatpush1.msra.mxu0 0.0
    %543 = vmatprep.subr.mxu0 0.0
    %544 = vmatpush1.msra.mxu0 0.0
    %545 = vmatprep.subr.mxu0 0.0
    %546 = vmatpush1.msra.mxu0 0.0
    %547 = vmatprep.subr.mxu0 0.0
    %548 = vmatpush1.msra.mxu0 0.0
    %549 = vmatprep.subr.mxu0 0.0
    %550 = vmatpush1.msra.mxu0 0.0
    %551 = vmatprep.subr.mxu0 0.0
    %552 = vmatpush1.msra.mxu0 0.0
    %553 = vmatprep.subr.mxu0 0.0
    %554 = vmatpush1.msra.mxu0 0.0
    %555 = vmatprep.subr.mxu0 0.0
    %556 = vmatpush1.msra.mxu0 0.0
    %557 = vmatprep.subr.mxu0 0.0
    %558 = vmatpush1.msra.mxu0 0.0
    %559 = vmatprep.subr.mxu0 0.0
    %560 = vmatpush1.msra.mxu0 0.0
    %561 = vmatprep.subr.mxu0 0.0
    %562 = vmatpush1.msra.mxu0 0.0
    %563 = vmatprep.subr.mxu0 0.0
    %564 = vmatpush1.msra.mxu0 0.0
    %565 = vmatprep.subr.mxu0 0.0
    %566 = vmatpush1.msra.mxu0 0.0
    %567 = vmatprep.subr.mxu0 0.0
    %568 = vmatpush1.msra.mxu0 0.0
    %569 = vmatprep.subr.mxu0 0.0
    %570 = vmatpush1.msra.mxu0 0.0
    %571 = vmatprep.subr.mxu0 0.0
    %572 = vmatpush1.msra.mxu0 0.0
    %573 = vmatprep.subr.mxu0 0.0
    %574 = vmatpush1.msra.mxu0 0.0
    %575 = vmatprep.subr.mxu0 0.0
    %576 = vmatpush1.msra.mxu0 0.0
    %577 = vmatprep.subr.mxu0 0.0
    %578 = vmatpush1.msra.mxu0 0.0
    %579 = vmatprep.subr.mxu0 0.0
    %580 = vmatpush1.msra.mxu0 0.0
    %581 = vmatprep.subr.mxu0 0.0
    %582 = vmatpush1.msra.mxu0 0.0
    %583 = vmatprep.mubr.f32.mxu0 0.0
    %584 = vmatmul.mubr.f32.gmra.mrb[0].mxu0 %v517
    %v585 = vpop.f32.mrb[0].mxu0
    %v586 = vadd.f32 0.0, %v585
    %v587 = vpop.f32.mrb[0].mxu0
    %588 = vdwg.mxu0
    %v589 = vld [vmem:[%s3] sm:$0xff]
    %v590 = vld [vmem:[%s3 + $0x8] sm:$0xff]
    %v591 = vld [vmem:[%s3 + $0x10] sm:$0xff]
    %v592 = vld [vmem:[%s3 + $0x18] sm:$0xff]
    %v593 = vld [vmem:[%s3 + $0x20] sm:$0xff]
    %v594 = vld [vmem:[%s3 + $0x28] sm:$0xff]
    %v595 = vld [vmem:[%s3 + $0x30] sm:$0xff]
    %v596 = vld [vmem:[%s3 + $0x38] sm:$0xff]
    %v597 = vld [vmem:[%s3 + $0x40] sm:$0xff]
    %v598 = vld [vmem:[%s3 + $0x48] sm:$0xff]
    %v599 = vld [vmem:[%s3 + $0x50] sm:$0xff]
    %v600 = vld [vmem:[%s3 + $0x58] sm:$0xff]
    %v601 = vld [vmem:[%s3 + $0x60] sm:$0xff]
    %v602 = vld [vmem:[%s3 + $0x68] sm:$0xff]
    %v603 = vld [vmem:[%s3 + $0x70] sm:$0xff]
    %v604 = vld [vmem:[%s3 + $0x78] sm:$0xff]
    %v605 = vld [vmem:[%s3 + $0x80] sm:$0xff]
    %v606 = vld [vmem:[%s3 + $0x88] sm:$0xff]
    %v607 = vld [vmem:[%s3 + $0x90] sm:$0xff]
    %v608 = vld [vmem:[%s3 + $0x98] sm:$0xff]
    %v609 = vld [vmem:[%s3 + $0xa0] sm:$0xff]
    %v610 = vld [vmem:[%s3 + $0xa8] sm:$0xff]
    %v611 = vld [vmem:[%s3 + $0xb0] sm:$0xff]
    %v612 = vld [vmem:[%s3 + $0xb8] sm:$0xff]
    %v613 = vld [vmem:[%s3 + $0xc0] sm:$0xff]
    %v614 = vld [vmem:[%s3 + $0xc8] sm:$0xff]
    %v615 = vld [vmem:[%s3 + $0xd0] sm:$0xff]
    %v616 = vld [vmem:[%s3 + $0xd8] sm:$0xff]
    %v617 = vld [vmem:[%s3 + $0xe0] sm:$0xff]
    %v618 = vld [vmem:[%s3 + $0xe8] sm:$0xff]
    %v619 = vld [vmem:[%s3 + $0xf0] sm:$0xff]
    %v620 = vld [vmem:[%s3 + $0xf8] sm:$0xff]
    %v621 = vld [vmem:[%s4] sm:$0x1]
    %v623 = vlaneseq
    %v624 = vshrl.u32 %v623, 7
    %v625 = vsub.s32 0, %v624
    %v626 = vrot.slane %v621, %v625
    %628 = vmatprep.subr.mxu0 0.0
    %629 = vmatpush1.msra.mxu0 %v589
    %630 = vmatprep.subr.mxu0 0.0
    %631 = vmatpush1.msra.mxu0 %v590
    %632 = vmatprep.subr.mxu0 0.0
    %633 = vmatpush1.msra.mxu0 %v591
    %634 = vmatprep.subr.mxu0 0.0
    %635 = vmatpush1.msra.mxu0 %v592
    %636 = vmatprep.subr.mxu0 0.0
    %637 = vmatpush1.msra.mxu0 %v593
    %638 = vmatprep.subr.mxu0 0.0
    %639 = vmatpush1.msra.mxu0 %v594
    %640 = vmatprep.subr.mxu0 0.0
    %641 = vmatpush1.msra.mxu0 %v595
    %642 = vmatprep.subr.mxu0 0.0
    %643 = vmatpush1.msra.mxu0 %v596
    %644 = vmatprep.subr.mxu0 0.0
    %645 = vmatpush1.msra.mxu0 %v597
    %646 = vmatprep.subr.mxu0 0.0
    %647 = vmatpush1.msra.mxu0 %v598
    %648 = vmatprep.subr.mxu0 0.0
    %649 = vmatpush1.msra.mxu0 %v599
    %650 = vmatprep.subr.mxu0 0.0
    %651 = vmatpush1.msra.mxu0 %v600
    %652 = vmatprep.subr.mxu0 0.0
    %653 = vmatpush1.msra.mxu0 %v601
    %654 = vmatprep.subr.mxu0 0.0
    %655 = vmatpush1.msra.mxu0 %v602
    %656 = vmatprep.subr.mxu0 0.0
    %657 = vmatpush1.msra.mxu0 %v603
    %658 = vmatprep.subr.mxu0 0.0
    %659 = vmatpush1.msra.mxu0 %v604
    %660 = vmatprep.subr.mxu0 0.0
    %661 = vmatpush1.msra.mxu0 %v605
    %662 = vmatprep.subr.mxu0 0.0
    %663 = vmatpush1.msra.mxu0 %v606
    %664 = vmatprep.subr.mxu0 0.0
    %665 = vmatpush1.msra.mxu0 %v607
    %666 = vmatprep.subr.mxu0 0.0
    %667 = vmatpush1.msra.mxu0 %v608
    %668 = vmatprep.subr.mxu0 0.0
    %669 = vmatpush1.msra.mxu0 %v609
    %670 = vmatprep.subr.mxu0 0.0
    %671 = vmatpush1.msra.mxu0 %v610
    %672 = vmatprep.subr.mxu0 0.0
    %673 = vmatpush1.msra.mxu0 %v611
    %674 = vmatprep.subr.mxu0 0.0
    %675 = vmatpush1.msra.mxu0 %v612
    %676 = vmatprep.subr.mxu0 0.0
    %677 = vmatpush1.msra.mxu0 %v613
    %678 = vmatprep.subr.mxu0 0.0
    %679 = vmatpush1.msra.mxu0 %v614
    %680 = vmatprep.subr.mxu0 0.0
    %681 = vmatpush1.msra.mxu0 %v615
    %682 = vmatprep.subr.mxu0 0.0
    %683 = vmatpush1.msra.mxu0 %v616
    %684 = vmatprep.subr.mxu0 0.0
    %685 = vmatpush1.msra.mxu0 %v617
    %686 = vmatprep.subr.mxu0 0.0
    %687 = vmatpush1.msra.mxu0 %v618
    %688 = vmatprep.subr.mxu0 0.0
    %689 = vmatpush1.msra.mxu0 %v619
    %690 = vmatprep.subr.mxu0 0.0
    %691 = vmatpush1.msra.mxu0 %v620
    %692 = vmatprep.mubr.f32.mxu0 %v586
    %693 = vmatmul.mubr.f32.gmra.mrb[0].mxu0 %v432
    %v694 = vpop.f32.mrb[0].mxu0
    %v695 = vadd.f32 %v626, %v694
    %v696 = vpop.f32.mrb[0].mxu0
    %697 = vdwg.mxu0
    %698 = vst.msk [vmem:[#allocation2] sm:$0xff] %vm63, %v695
    // Predicated region
    $region26: #{tpu_custom_call.1} parent=1 // pred_check
      _
    $region27: #{tpu_custom_call.1} parent=1 // pred_check_branch
      %700 = sbr.rel (0) target = $region29
    $region28: #{tpu_custom_call.1} parent=1 // pred_region
      %s702 = ssub.s32 128, 128
      %703 = vsyncadd [#allocation3], %s702
      %s705 = sshll.u32 [#allocation2], 4
      %s706 = int_to_ptr.vmem [resolvable:$true] %s705
      %708 = dma.vmem_to_hbm [thread:$0]  %s706, 128, %s6, [#allocation3]
    $region29: #{tpu_custom_call.1} parent=1 // pred_fallthru
      _
    // Predicated region
    $region30: #{tpu_custom_call.1} parent=1 // pred_check
      _
    $region31: #{tpu_custom_call.1} parent=1 // pred_check_branch
      %710 = sbr.rel (0) target = $region33
    $region32: #{tpu_custom_call.1} parent=1 // pred_region
      %711 = dma.done [#allocation3], 128
    $region33: #{tpu_custom_call.1} parent=1 // pred_fallthru
      _
    %712 = vsyncpa [#allocation3], 1

</llo_original>
